<compile_context>
chip_gen: v6e
topology: v6e:2x2x1
jax: 0.10.0
libtpu: 0.0.40
codegen_flags: <defaults>
</compile_context>

<pallas_src>
import jax
import jax.numpy as jnp
from jax.experimental import pallas as pl
from jax.experimental.pallas import tpu as pltpu


# ---------------------------------------------------------------------------
# Main path: pure HBM->HBM DMA over tile-aligned per-batch 2D slabs.
# ---------------------------------------------------------------------------
def _cat_chans_dma_kernel(*refs):
    """refs = (*x_hbm_refs, out_hbm_ref, sem).

    Every ref lives in HBM (memory_space=pl.ANY).  Input i, shaped
    (N, C_i*HW), is copied with a single strided DMA into output columns
    [off_i*HW, (off_i+C_i)*HW).  All offsets/widths are multiples of 128, so
    each destination region is a set of whole (8,128) tiles.
    """
    x_refs = refs[:-2]
    out_ref = refs[-2]
    sem = refs[-1]

    copies = []
    off = 0
    for i, x_ref in enumerate(x_refs):
        span = x_ref.shape[1]
        cp = pltpu.make_async_copy(
            x_ref, out_ref.at[:, off:off + span], sem.at[i])
        cp.start()
        copies.append(cp)
        off += span
    # All DMAs run concurrently on the DMA engines; just drain them.
    for cp in copies:
        cp.wait()


def _cat_chans_dma(xs_flat, n, total_cols, dtype):
    n_in = len(xs_flat)
    bytes_total = n * total_cols * jnp.dtype(dtype).itemsize
    return pl.pallas_call(
        _cat_chans_dma_kernel,
        out_shape=jax.ShapeDtypeStruct((n, total_cols), dtype),
        in_specs=[pl.BlockSpec(memory_space=pl.ANY)] * n_in,
        out_specs=pl.BlockSpec(memory_space=pl.ANY),
        scratch_shapes=[pltpu.SemaphoreType.DMA((n_in,))],
        cost_estimate=pl.CostEstimate(
            flops=0, transcendentals=0, bytes_accessed=2 * bytes_total),
    )(*xs_flat)


# ---------------------------------------------------------------------------
# Fallback path: gridded lane-dense vreg copy (H*W not 128-aligned).
# ---------------------------------------------------------------------------
def _cat_chans_copy_kernel(*refs):
    """refs = (*x_refs, out_ref); blocks (1, C_i, hw_tile) / (1, total_C, hw_tile)."""
    x_refs = refs[:-1]
    o_ref = refs[-1]
    off = 0
    for x_ref in x_refs:
        c = x_ref.shape[1]
        o_ref[:, off:off + c, :] = x_ref[...]
        off += c


# Double-buffered footprint target: fits v7x's 64 MiB physical / 32 MiB scoped
# VMEM with headroom, while keeping per-block DMAs well past the ~0.35 us
# per-grid-step overhead.
_VMEM_BUDGET_BYTES = 24 * 1024 * 1024


def _pick_hw_tile(hw, cs, total_c, itemsize):
    """Trailing-axis tile from a VMEM byte budget (not a fixed cap).

    Double-buffered footprint = 2 * (sum(C_i) + total_C) * hw_tile * itemsize.
    Prefer multiples of 128 for lane-dense stores; the grid uses cdiv so the
    tile need not divide hw (ragged last block is masked by Pallas).
    """
    per_lane = 2 * (sum(cs) + total_c) * itemsize
    max_tile = max(_VMEM_BUDGET_BYTES // per_lane, 1)
    if hw <= max_tile:
        return hw
    if max_tile >= 128:
        return (max_tile // 128) * 128
    return max_tile


def _cat_chans_gridded(xs_flat, cs, n, total_c, hw, dtype):
    itemsize = jnp.dtype(dtype).itemsize
    hw_tile = _pick_hw_tile(hw, cs, total_c, itemsize)
    # Grid has at least N parallel steps (megacore sharding on v7x).
    grid = (n, pl.cdiv(hw, hw_tile))
    in_specs = [
        pl.BlockSpec((1, c, hw_tile), lambda i, j: (i, 0, j)) for c in cs
    ]
    out_spec = pl.BlockSpec((1, total_c, hw_tile), lambda i, j: (i, 0, j))
    bytes_total = n * total_c * hw * itemsize
    return pl.pallas_call(
        _cat_chans_copy_kernel,
        out_shape=jax.ShapeDtypeStruct((n, total_c, hw), dtype),
        grid=grid,
        in_specs=in_specs,
        out_specs=out_spec,
        compiler_params=pltpu.CompilerParams(
            dimension_semantics=("parallel", "parallel"),
            vmem_limit_bytes=32 * 1024 * 1024),
        cost_estimate=pl.CostEstimate(
            flops=0, transcendentals=0, bytes_accessed=2 * bytes_total),
    )(*xs_flat)


# ---------------------------------------------------------------------------
# Wrapper
# ---------------------------------------------------------------------------
def cat_chans_forward(xs):
    """Pallas equivalent of CatChans.forward: returns (concat(xs, axis=1), 0)."""
    n, _, h, w = xs[0].shape
    dtype = xs[0].dtype
    # Validate the implicit assumptions of a channel concat (review note).
    for x in xs:
        assert x.ndim == 4 and x.shape[0] == n and x.shape[2:] == (h, w), (
            "all inputs must share (N, H, W)")
        assert x.dtype == dtype, "all inputs must share dtype"

    cs = [int(x.shape[1]) for x in xs]
    total_c = sum(cs)
    hw = h * w

    if hw % 128 == 0:
        # Tile-aligned slabs -> pure HBM->HBM DMA, no VMEM round trip.
        xs_flat = [x.reshape(n, c * hw) for x, c in zip(xs, cs)]
        out_flat = _cat_chans_dma(xs_flat, n, total_c * hw, dtype)
        return out_flat.reshape(n, total_c, h, w), 0

    # Small / odd spatial sizes: gridded lane-dense vreg copy through VMEM.
    xs_flat = [x.reshape(n, c, hw) for x, c in zip(xs, cs)]
    out_flat = _cat_chans_gridded(xs_flat, cs, n, total_c, hw, dtype)
    return out_flat.reshape(n, total_c, h, w), 0


class CatChans:
    """JAX/Pallas mirror of the PyTorch CatChans module (no parameters)."""

    def __init__(self):
        self.n_chans = None

    def forward(self, xs, fixed=None):
        n_chans = tuple(int(a_x.shape[1]) for a_x in xs)
        if self.n_chans is None:
            self.n_chans = n_chans
        else:
            assert n_chans == self.n_chans
        return cat_chans_forward(xs)

    def invert(self, ys, fixed=None):
        assert self.n_chans is not None, 'please do forward first'
        if ys is not None:
            xs = []
            bounds = [0]
            for c in self.n_chans:
                bounds.append(bounds[-1] + c)
            for i_b in range(len(bounds) - 1):
                xs.append(ys[:, bounds[i_b]:bounds[i_b + 1]])
        else:
            xs = [None] * len(self.n_chans)
        return xs, 0


if __name__ == "__main__":
    key = jax.random.PRNGKey(0)
    k1, k2, k3 = jax.random.split(key, 3)

    # small NCHW inputs with different channel counts (H*W = 256, DMA path)
    x1 = jax.random.normal(k1, (2, 4, 16, 16), dtype=jnp.float32)
    x2 = jax.random.normal(k2, (2, 8, 16, 16), dtype=jnp.float32)
    x3 = jax.random.normal(k3, (2, 2, 16, 16), dtype=jnp.float32)
    xs = [x1, x2, x3]

    mod = CatChans()
    y, logdet = mod.forward(xs)
    y = jax.block_until_ready(y)

    # reference check against plain JAX concat
    y_ref = jnp.concatenate(xs, axis=1)
    assert y.shape == (2, 14, 16, 16)
    assert logdet == 0
    assert jnp.allclose(y, y_ref), "mismatch vs jnp.concatenate (DMA path)"

    # also exercise the gridded fallback path (H*W = 64, not 128-aligned)
    k4, k5 = jax.random.split(k3)
    s1 = jax.random.normal(k4, (2, 4, 8, 8), dtype=jnp.float32)
    s2 = jax.random.normal(k5, (2, 2, 8, 8), dtype=jnp.float32)
    ys_small, _ = cat_chans_forward([s1, s2])
    ys_small = jax.block_until_ready(ys_small)
    assert jnp.allclose(ys_small, jnp.concatenate([s1, s2], axis=1)), (
        "mismatch vs jnp.concatenate (gridded path)")

    # round-trip through invert
    xs_back, _ = mod.invert(y)
    for a, b in zip(xs, xs_back):
        assert jnp.allclose(a, b)

    print("KERNEL_OK")
</pallas_src>

<mosaic_0001>
module attributes {stable_mosaic.version = 11 : i64} {
  func.func @_cat_chans_dma_kernel(%arg0: memref<2x1024xf32, #tpu.memory_space<any>>, %arg1: memref<2x2048xf32, #tpu.memory_space<any>>, %arg2: memref<2x512xf32, #tpu.memory_space<any>>, %arg3: memref<2x3584xf32, #tpu.memory_space<any>>, %arg4: memref<3x!tpu.dma_semaphore, #tpu.memory_space<semaphore_mem>>) attributes {dimension_semantics = [], scalar_prefetch = 0 : i64, scratch_operands = 1 : i64, tpu.core_type = #tpu.core_type<tc>} {
    %c0_i32 = arith.constant 0 : i32
    %c0_i32_0 = arith.constant 0 : i32
    %c0_i32_1 = arith.constant 0 : i32
    %0 = tpu.memref_slice %arg3[%c0_i32_0, %c0_i32_1] : memref<2x3584xf32, #tpu.memory_space<any>> -> memref<2x1024xf32, #tpu.memory_space<any>>
    %1 = tpu.memref_slice %arg4[%c0_i32] : memref<3x!tpu.dma_semaphore, #tpu.memory_space<semaphore_mem>> -> memref<1x!tpu.dma_semaphore, #tpu.memory_space<semaphore_mem>>
    %2 = tpu.memref_squeeze %1 : memref<1x!tpu.dma_semaphore, #tpu.memory_space<semaphore_mem>> -> memref<!tpu.dma_semaphore, #tpu.memory_space<semaphore_mem>>
    tpu.enqueue_dma source(%arg0 : memref<2x1024xf32, #tpu.memory_space<any>>) target(%0 : memref<2x1024xf32, #tpu.memory_space<any>>) target_semaphore(%2 : memref<!tpu.dma_semaphore, #tpu.memory_space<semaphore_mem>>)
    %c1_i32 = arith.constant 1 : i32
    %c0_i32_2 = arith.constant 0 : i32
    %c1024_i32 = arith.constant 1024 : i32
    %3 = tpu.memref_slice %arg3[%c0_i32_2, %c1024_i32] : memref<2x3584xf32, #tpu.memory_space<any>> -> memref<2x2048xf32, #tpu.memory_space<any>>
    %4 = tpu.memref_slice %arg4[%c1_i32] : memref<3x!tpu.dma_semaphore, #tpu.memory_space<semaphore_mem>> -> memref<1x!tpu.dma_semaphore, #tpu.memory_space<semaphore_mem>>
    %5 = tpu.memref_squeeze %4 : memref<1x!tpu.dma_semaphore, #tpu.memory_space<semaphore_mem>> -> memref<!tpu.dma_semaphore, #tpu.memory_space<semaphore_mem>>
    tpu.enqueue_dma source(%arg1 : memref<2x2048xf32, #tpu.memory_space<any>>) target(%3 : memref<2x2048xf32, #tpu.memory_space<any>>) target_semaphore(%5 : memref<!tpu.dma_semaphore, #tpu.memory_space<semaphore_mem>>)
    %c2_i32 = arith.constant 2 : i32
    %c0_i32_3 = arith.constant 0 : i32
    %c3072_i32 = arith.constant 3072 : i32
    %6 = tpu.memref_slice %arg3[%c0_i32_3, %c3072_i32] : memref<2x3584xf32, #tpu.memory_space<any>> -> memref<2x512xf32, #tpu.memory_space<any>>
    %7 = tpu.memref_slice %arg4[%c2_i32] : memref<3x!tpu.dma_semaphore, #tpu.memory_space<semaphore_mem>> -> memref<1x!tpu.dma_semaphore, #tpu.memory_space<semaphore_mem>>
    %8 = tpu.memref_squeeze %7 : memref<1x!tpu.dma_semaphore, #tpu.memory_space<semaphore_mem>> -> memref<!tpu.dma_semaphore, #tpu.memory_space<semaphore_mem>>
    tpu.enqueue_dma source(%arg2 : memref<2x512xf32, #tpu.memory_space<any>>) target(%6 : memref<2x512xf32, #tpu.memory_space<any>>) target_semaphore(%8 : memref<!tpu.dma_semaphore, #tpu.memory_space<semaphore_mem>>)
    %c0_i32_4 = arith.constant 0 : i32
    %c0_i32_5 = arith.constant 0 : i32
    %c0_i32_6 = arith.constant 0 : i32
    %9 = tpu.memref_slice %arg3[%c0_i32_5, %c0_i32_6] : memref<2x3584xf32, #tpu.memory_space<any>> -> memref<2x1024xf32, #tpu.memory_space<any>>
    %10 = tpu.memref_slice %arg4[%c0_i32_4] : memref<3x!tpu.dma_semaphore, #tpu.memory_space<semaphore_mem>> -> memref<1x!tpu.dma_semaphore, #tpu.memory_space<semaphore_mem>>
    %11 = tpu.memref_squeeze %10 : memref<1x!tpu.dma_semaphore, #tpu.memory_space<semaphore_mem>> -> memref<!tpu.dma_semaphore, #tpu.memory_space<semaphore_mem>>
    tpu.wait_dma2 semaphore(%11 : memref<!tpu.dma_semaphore, #tpu.memory_space<semaphore_mem>>) src(%arg0 : memref<2x1024xf32, #tpu.memory_space<any>>) dst(%9 : memref<2x1024xf32, #tpu.memory_space<any>>)
    %c1_i32_7 = arith.constant 1 : i32
    %c0_i32_8 = arith.constant 0 : i32
    %c1024_i32_9 = arith.constant 1024 : i32
    %12 = tpu.memref_slice %arg3[%c0_i32_8, %c1024_i32_9] : memref<2x3584xf32, #tpu.memory_space<any>> -> memref<2x2048xf32, #tpu.memory_space<any>>
    %13 = tpu.memref_slice %arg4[%c1_i32_7] : memref<3x!tpu.dma_semaphore, #tpu.memory_space<semaphore_mem>> -> memref<1x!tpu.dma_semaphore, #tpu.memory_space<semaphore_mem>>
    %14 = tpu.memref_squeeze %13 : memref<1x!tpu.dma_semaphore, #tpu.memory_space<semaphore_mem>> -> memref<!tpu.dma_semaphore, #tpu.memory_space<semaphore_mem>>
    tpu.wait_dma2 semaphore(%14 : memref<!tpu.dma_semaphore, #tpu.memory_space<semaphore_mem>>) src(%arg1 : memref<2x2048xf32, #tpu.memory_space<any>>) dst(%12 : memref<2x2048xf32, #tpu.memory_space<any>>)
    %c2_i32_10 = arith.constant 2 : i32
    %c0_i32_11 = arith.constant 0 : i32
    %c3072_i32_12 = arith.constant 3072 : i32
    %15 = tpu.memref_slice %arg3[%c0_i32_11, %c3072_i32_12] : memref<2x3584xf32, #tpu.memory_space<any>> -> memref<2x512xf32, #tpu.memory_space<any>>
    %16 = tpu.memref_slice %arg4[%c2_i32_10] : memref<3x!tpu.dma_semaphore, #tpu.memory_space<semaphore_mem>> -> memref<1x!tpu.dma_semaphore, #tpu.memory_space<semaphore_mem>>
    %17 = tpu.memref_squeeze %16 : memref<1x!tpu.dma_semaphore, #tpu.memory_space<semaphore_mem>> -> memref<!tpu.dma_semaphore, #tpu.memory_space<semaphore_mem>>
    tpu.wait_dma2 semaphore(%17 : memref<!tpu.dma_semaphore, #tpu.memory_space<semaphore_mem>>) src(%arg2 : memref<2x512xf32, #tpu.memory_space<any>>) dst(%15 : memref<2x512xf32, #tpu.memory_space<any>>)
    return
  }
}

</mosaic_0001>

<llo_original>
// kernel: tpu_custom_call.1
$region0: #{tpu_custom_call.1}
  #allocation0 [shape = 'u32[]', space=smem, size = 0x4, offset = 0x4, fixed_abs, tag = 'smem constant byte address 0x4 - core index']
  #allocation1 [shape = 'u32[144,128]{1,0:T(1,128)}', space=vmem, size = 0x12000, scoped, tag = 'internal scratch']
  #allocation2 [shape = 's32[3]{0}', space=sflag, size = 0xc, scoped, tag = 'scratch operand']
  #allocation3 [shape = 's32[]', space=sflag, size = 0x4, offset = 0, fixed_abs, tag = 'sflag constant byte address 0x0 - dummy sync flag']
  #allocation4 [shape = 'u32[0]{0}', space=smem, size = 0, offset = 0, fixed_abs, tag = 'smem constant byte address 0x0 - null']
  #allocation5 [shape = 's32[]', space=sflag, size = 0x4, offset = 0, fixed_abs, tag = 'sflag constant byte address 0x0 - dummy sync flag']
  #allocation6 [shape = 'u32[0]{0}', space=smem, size = 0, offset = 0, fixed_abs, tag = 'smem constant byte address 0x0 - null']
  #allocation7 [shape = 's32[]', space=sflag, size = 0x4, offset = 0, fixed_abs, tag = 'sflag constant byte address 0x0 - dummy sync flag']
  #allocation8 [shape = 'u32[0]{0}', space=smem, size = 0, offset = 0, fixed_abs, tag = 'smem constant byte address 0x0 - null']
  %s0 = inlined_call_operand.hbm [shape: f32[2,1024], index: 0, kind: input, shape index: {}]
  %s1 = inlined_call_operand.hbm [shape: f32[2,2048], index: 1, kind: input, shape index: {}]
  %s2 = inlined_call_operand.hbm [shape: f32[2,512], index: 2, kind: input, shape index: {}]
  %s3 = inlined_call_operand.hbm [shape: f32[2,3584], index: 3, kind: output, shape index: {}]
  %s4 = sld [smem:[#allocation0]]
  $region2: #{tpu_custom_call.1} parent=0
    _
  %s6 = ssub.s32 1, %s4
  %s7 = scalar_select 0, %s6, %s4
  %s9 = sshll.u32 1, 14
  %s10 = sxor.u32 4294967295, %s9
  %14 = dma.general %s0, 256, %s3, [#allocation2], 131072, [#allocation4], 0, 0
  %s15 = scalar_lea.hbm %s3, 256
  %s16 = scalar_lea.sflag [#allocation2], 1
  %s18 = sshll.u32 1, 14
  %s19 = sxor.u32 4294967295, %s18
  %23 = dma.general %s1, 512, %s15, %s16, 131072, [#allocation6], 0, 0
  %s24 = scalar_lea.hbm %s3, 768
  %s25 = scalar_lea.sflag [#allocation2], 2
  %s27 = sshll.u32 1, 14
  %s28 = sxor.u32 4294967295, %s27
  %32 = dma.general %s2, 128, %s24, %s25, 131072, [#allocation8], 0, 0
  %s33 = smul.u32 2, 1
  %s34 = smul.u32 %s33, 8
  %s35 = sshll.u32 %s34, 4
  %36 = dma.done [#allocation2], %s35
  %s37 = smul.u32 %s33, 16
  %s38 = sshll.u32 %s37, 4
  %39 = dma.done %s16, %s38
  %s40 = smul.u32 %s33, 4
  %s41 = sshll.u32 %s40, 4
  %42 = dma.done %s25, %s41
  %43 = vsyncmov [#allocation2]
  %s44 = vpop.sfrf %43
  %p45 = scmp.eq.s32.totalorder %s44, 0
  %p46 = pneg %p45
  %48 = shalt.err (%p46)
  %s49 = scalar_lea.sflag [#allocation2], 1
  %50 = vsyncmov %s49
  %s51 = vpop.sfrf %50
  %p52 = scmp.eq.s32.totalorder %s51, 0
  %p53 = pneg %p52
  %55 = shalt.err (%p53)
  %s56 = scalar_lea.sflag [#allocation2], 2
  %57 = vsyncmov %s56
  %s58 = vpop.sfrf %57
  %p59 = scmp.eq.s32.totalorder %s58, 0
  %p60 = pneg %p59
  %62 = shalt.err (%p60)

</llo_original>
